<compile_context>
chip_gen: v7x
topology: tpu7x:2x2x1
jax: 0.10.0
libtpu: 0.0.40
codegen_flags: <defaults>
</compile_context>

<pallas_src>
import jax
import jax.numpy as jnp
from jax.experimental import pallas as pl
from jax.experimental.pallas import tpu as pltpu

EPS = 1e-5
LANE = 128
V_ROWS = 16  # 9 per-feature vectors (b1,g1,be1,b2,g2,be2,b3,g3,be3) padded to 16


def _round_up(x, m):
    return (x + m - 1) // m * m


def _block_kernel(x_ref, w1_ref, w2_ref, w3_ref, vec_ref, o_ref):
    """One Block per grid step. Refs (leading B dim squeezed):
       x: (N, D_in_p), w1: (D_in_p, D_p), w2/w3: (D_p, D_p),
       vec: (V_ROWS, D_p) rows = [b1,g1,be1,b2,g2,be2,b3,g3,be3, 0...],
       o: (N, D_p)."""
    n = x_ref.shape[0]
    inv_n = jnp.float32(1.0 / n)
    vecs = vec_ref[...]  # (V_ROWS, D_p), loaded once

    def layer(h, w, row0):
        b = vecs[row0 + 0:row0 + 1]      # (1, D_p)
        g = vecs[row0 + 1:row0 + 2]
        be = vecs[row0 + 2:row0 + 3]
        # Linear (MXU) + bias, ReLU (VPU)
        y = jnp.dot(h, w, preferred_element_type=jnp.float32) + b
        y = jnp.maximum(y, 0.0)
        # BatchNorm1d (training-mode stats), single reduction pass:
        #   var = E[y^2] - mean^2, affine folded into scale/shift.
        s = jnp.sum(y, axis=0, keepdims=True)
        ss = jnp.sum(y * y, axis=0, keepdims=True)
        mean = s * inv_n
        var = jnp.maximum(ss * inv_n - mean * mean, 0.0)
        scale = g * jax.lax.rsqrt(var + EPS)   # gamma pad lanes are 0 -> pad output 0
        shift = be - mean * scale
        return y * scale + shift

    h = layer(x_ref[...], w1_ref[...], 0)
    h = layer(h, w2_ref[...], 3)
    h = layer(h, w3_ref[...], 6)
    o_ref[...] = h.astype(o_ref.dtype)


def block_forward_batched(x, params):
    """x: (B, N, D_in) f32. params: stacked per-block weights:
         w1: (B, D_in, D), w2/w3: (B, D, D), b*/g*/be*: (B, D).
       Returns (B, N, D) f32 (training-mode BN, matching PyTorch forward)."""
    B, N, D_in = x.shape
    D = params["w1"].shape[-1]
    D_in_p = _round_up(D_in, LANE)
    D_p = _round_up(D, LANE)
    f32 = jnp.float32

    # Lane-pad everything with zeros.  Padded lanes of gamma/beta are zero, so
    # padded output lanes are exactly 0 and are sliced off below.
    xp = jnp.zeros((B, N, D_in_p), f32).at[:, :, :D_in].set(x.astype(f32))
    w1 = jnp.zeros((B, D_in_p, D_p), f32).at[:, :D_in, :D].set(params["w1"])
    w2 = jnp.zeros((B, D_p, D_p), f32).at[:, :D, :D].set(params["w2"])
    w3 = jnp.zeros((B, D_p, D_p), f32).at[:, :D, :D].set(params["w3"])

    vecs = jnp.zeros((B, V_ROWS, D_p), f32)
    for r, name in enumerate(("b1", "g1", "be1", "b2", "g2", "be2",
                              "b3", "g3", "be3")):
        vecs = vecs.at[:, r, :D].set(params[name])

    # Advisory cost for the XLA scheduler.
    flops = int(2 * B * N * (D_in_p * D_p + 2 * D_p * D_p) + 12 * B * N * D_p)
    bytes_accessed = int(4 * (xp.size + w1.size + w2.size + w3.size
                              + vecs.size + B * N * D_p))
    cost = pl.CostEstimate(flops=flops, transcendentals=int(3 * B * D_p),
                           bytes_accessed=bytes_accessed)

    # NOTE: N is NOT tiled (each Block's full batch stays resident so the
    # single-pass BN statistics are exact).  If N is ever tiled, pad rows must
    # be masked out of the BN reductions and the divisor must stay the true N.
    out = pl.pallas_call(
        _block_kernel,
        out_shape=jax.ShapeDtypeStruct((B, N, D_p), f32),
        grid=(B,),
        in_specs=[
            pl.BlockSpec((None, N, D_in_p), lambda b: (b, 0, 0)),
            pl.BlockSpec((None, D_in_p, D_p), lambda b: (b, 0, 0)),
            pl.BlockSpec((None, D_p, D_p), lambda b: (b, 0, 0)),
            pl.BlockSpec((None, D_p, D_p), lambda b: (b, 0, 0)),
            pl.BlockSpec((None, V_ROWS, D_p), lambda b: (b, 0, 0)),
        ],
        out_specs=pl.BlockSpec((None, N, D_p), lambda b: (b, 0, 0)),
        compiler_params=pltpu.CompilerParams(
            dimension_semantics=("parallel",)),
        cost_estimate=cost,
    )(xp, w1, w2, w3, vecs)

    return out[:, :, :D]


def init_block_params(key, B, D_in, D=20):
    """Deterministic synthetic parameters for B independent (unshared) Blocks.
       Linear weights stored as (in, out) so the kernel computes x @ W + b."""
    k = jax.random.split(key, 6)

    def lin(kw, kb, fan_in, fan_out):
        bound = 1.0 / float(fan_in) ** 0.5
        w = jax.random.uniform(kw, (B, fan_in, fan_out), jnp.float32, -bound, bound)
        b = jax.random.uniform(kb, (B, fan_out), jnp.float32, -bound, bound)
        return w, b

    w1, b1 = lin(k[0], k[3], D_in, D)
    w2, b2 = lin(k[1], k[4], D, D)
    w3, b3 = lin(k[2], k[5], D, D)
    ones = jnp.ones((B, D), jnp.float32)    # BatchNorm1d weight (gamma)
    zeros = jnp.zeros((B, D), jnp.float32)  # BatchNorm1d bias (beta)
    return dict(w1=w1, b1=b1, g1=ones, be1=zeros,
                w2=w2, b2=b2, g2=ones, be2=zeros,
                w3=w3, b3=b3, g3=ones, be3=zeros)


def _reference(x, p):
    """Plain-JAX reference mirroring the PyTorch forward (training-mode BN),
       vmapped over the B independent Blocks."""
    def one(xb, w1, b1, g1, be1, w2, b2, g2, be2, w3, b3, g3, be3):
        h = xb
        for (w, b, g, be) in ((w1, b1, g1, be1), (w2, b2, g2, be2),
                              (w3, b3, g3, be3)):
            y = h @ w + b[None, :]
            y = jnp.maximum(y, 0.0)
            m = jnp.mean(y, axis=0, keepdims=True)
            v = jnp.mean((y - m) ** 2, axis=0, keepdims=True)
            h = (y - m) / jnp.sqrt(v + EPS) * g[None, :] + be[None, :]
        return h
    return jax.vmap(one)(x, p["w1"], p["b1"], p["g1"], p["be1"],
                         p["w2"], p["b2"], p["g2"], p["be2"],
                         p["w3"], p["b3"], p["g3"], p["be3"])


if __name__ == "__main__":
    key = jax.random.PRNGKey(0)
    kx, kp = jax.random.split(key)

    # Small shapes consistent with Block(D_in=32, D_out=*, D=20); B unshared Blocks.
    B, N, D_in, D = 4, 8, 32, 20
    x = jax.random.normal(kx, (B, N, D_in), jnp.float32)
    params = init_block_params(kp, B, D_in, D)

    out = jax.block_until_ready(block_forward_batched(x, params))
    ref = _reference(x, params)

    assert out.shape == (B, N, D)
    assert jnp.max(jnp.abs(out - ref)) < 1e-3, "mismatch vs JAX reference"

    # TODO(synk): BatchNorm running_mean/running_var are not updated (forward
    # output matches PyTorch training-mode forward; module state is not modeled).
    print("KERNEL_OK")
</pallas_src>

<mosaic_0001>
module attributes {stable_mosaic.version = 11 : i64} {
  func.func @_block_kernel(%arg0: i32, %arg1: memref<1x8x128xf32, #tpu.memory_space<vmem>>, %arg2: memref<1x128x128xf32, #tpu.memory_space<vmem>>, %arg3: memref<1x128x128xf32, #tpu.memory_space<vmem>>, %arg4: memref<1x128x128xf32, #tpu.memory_space<vmem>>, %arg5: memref<1x16x128xf32, #tpu.memory_space<vmem>>, %arg6: memref<1x8x128xf32, #tpu.memory_space<vmem>>) attributes {dimension_semantics = [#tpu.dimension_semantics<parallel>], iteration_bounds = array<i64: 4>, scalar_prefetch = 0 : i64, scratch_operands = 0 : i64, tpu.core_type = #tpu.core_type<tc>, window_params = [{transform_indices = @transform_0, window_bounds = array<i64: 1, 8, 128>}, {transform_indices = @transform_1, window_bounds = array<i64: 1, 128, 128>}, {transform_indices = @transform_2, window_bounds = array<i64: 1, 128, 128>}, {transform_indices = @transform_3, window_bounds = array<i64: 1, 128, 128>}, {transform_indices = @transform_4, window_bounds = array<i64: 1, 16, 128>}, {transform_indices = @transform_5, window_bounds = array<i64: 1, 8, 128>}]} {
    %c0 = arith.constant 0 : index
    %c0_0 = arith.constant 0 : index
    %c0_1 = arith.constant 0 : index
    %0 = vector.load %arg5[%c0, %c0_0, %c0_1] : memref<1x16x128xf32, #tpu.memory_space<vmem>>, vector<1x16x128xf32>
    %1 = vector.shape_cast %0 : vector<1x16x128xf32> to vector<16x128xf32>
    %c0_2 = arith.constant 0 : index
    %c0_3 = arith.constant 0 : index
    %c0_4 = arith.constant 0 : index
    %2 = vector.load %arg1[%c0_2, %c0_3, %c0_4] : memref<1x8x128xf32, #tpu.memory_space<vmem>>, vector<1x8x128xf32>
    %3 = vector.shape_cast %2 : vector<1x8x128xf32> to vector<8x128xf32>
    %c0_5 = arith.constant 0 : index
    %c0_6 = arith.constant 0 : index
    %c0_7 = arith.constant 0 : index
    %4 = vector.load %arg2[%c0_5, %c0_6, %c0_7] : memref<1x128x128xf32, #tpu.memory_space<vmem>>, vector<1x128x128xf32>
    %5 = vector.shape_cast %4 : vector<1x128x128xf32> to vector<128x128xf32>
    %6 = vector.extract_strided_slice %1 {offsets = [0, 0], sizes = [1, 128], strides = [1, 1]} : vector<16x128xf32> to vector<1x128xf32>
    %7 = vector.extract_strided_slice %1 {offsets = [1, 0], sizes = [1, 128], strides = [1, 1]} : vector<16x128xf32> to vector<1x128xf32>
    %8 = vector.extract_strided_slice %1 {offsets = [2, 0], sizes = [1, 128], strides = [1, 1]} : vector<16x128xf32> to vector<1x128xf32>
    %cst = arith.constant dense<0.000000e+00> : vector<8x128xf32>
    %9 = tpu.matmul %3, %5, %cst {dimension_numbers = #tpu.dot_dimension_numbers<[1], [0], [0], [1], [0, 0, 1, 1], [], []>} : vector<8x128xf32>, vector<128x128xf32>, vector<8x128xf32> -> vector<8x128xf32>
    %10 = vector.broadcast %6 : vector<1x128xf32> to vector<8x128xf32>
    %11 = arith.addf %9, %10 : vector<8x128xf32>
    %cst_8 = arith.constant 0.000000e+00 : f32
    %12 = vector.broadcast %cst_8 : f32 to vector<8x128xf32>
    %13 = arith.maximumf %11, %12 : vector<8x128xf32>
    %cst_9 = arith.constant dense<0.000000e+00> : vector<128xf32>
    %14 = vector.multi_reduction <add>, %13, %cst_9 [0] : vector<8x128xf32> to vector<128xf32>
    %15 = vector.shape_cast %14 : vector<128xf32> to vector<1x128xf32>
    %16 = arith.mulf %13, %13 : vector<8x128xf32>
    %cst_10 = arith.constant dense<0.000000e+00> : vector<128xf32>
    %17 = vector.multi_reduction <add>, %16, %cst_10 [0] : vector<8x128xf32> to vector<128xf32>
    %18 = vector.shape_cast %17 : vector<128xf32> to vector<1x128xf32>
    %cst_11 = arith.constant 1.250000e-01 : f32
    %19 = vector.broadcast %cst_11 : f32 to vector<1x128xf32>
    %20 = arith.mulf %15, %19 : vector<1x128xf32>
    %cst_12 = arith.constant 1.250000e-01 : f32
    %21 = vector.broadcast %cst_12 : f32 to vector<1x128xf32>
    %22 = arith.mulf %18, %21 : vector<1x128xf32>
    %23 = arith.mulf %20, %20 : vector<1x128xf32>
    %24 = arith.subf %22, %23 : vector<1x128xf32>
    %cst_13 = arith.constant 0.000000e+00 : f32
    %25 = vector.broadcast %cst_13 : f32 to vector<1x128xf32>
    %26 = arith.maximumf %24, %25 : vector<1x128xf32>
    %cst_14 = arith.constant 9.99999974E-6 : f32
    %27 = vector.broadcast %cst_14 : f32 to vector<1x128xf32>
    %28 = arith.addf %26, %27 : vector<1x128xf32>
    %29 = math.rsqrt %28 : vector<1x128xf32>
    %30 = arith.mulf %7, %29 : vector<1x128xf32>
    %31 = arith.mulf %20, %30 : vector<1x128xf32>
    %32 = arith.subf %8, %31 : vector<1x128xf32>
    %33 = vector.broadcast %30 : vector<1x128xf32> to vector<8x128xf32>
    %34 = arith.mulf %13, %33 : vector<8x128xf32>
    %35 = vector.broadcast %32 : vector<1x128xf32> to vector<8x128xf32>
    %36 = arith.addf %34, %35 : vector<8x128xf32>
    %c0_15 = arith.constant 0 : index
    %c0_16 = arith.constant 0 : index
    %c0_17 = arith.constant 0 : index
    %37 = vector.load %arg3[%c0_15, %c0_16, %c0_17] : memref<1x128x128xf32, #tpu.memory_space<vmem>>, vector<1x128x128xf32>
    %38 = vector.shape_cast %37 : vector<1x128x128xf32> to vector<128x128xf32>
    %39 = vector.extract_strided_slice %1 {offsets = [3, 0], sizes = [1, 128], strides = [1, 1]} : vector<16x128xf32> to vector<1x128xf32>
    %40 = vector.extract_strided_slice %1 {offsets = [4, 0], sizes = [1, 128], strides = [1, 1]} : vector<16x128xf32> to vector<1x128xf32>
    %41 = vector.extract_strided_slice %1 {offsets = [5, 0], sizes = [1, 128], strides = [1, 1]} : vector<16x128xf32> to vector<1x128xf32>
    %cst_18 = arith.constant dense<0.000000e+00> : vector<8x128xf32>
    %42 = tpu.matmul %36, %38, %cst_18 {dimension_numbers = #tpu.dot_dimension_numbers<[1], [0], [0], [1], [0, 0, 1, 1], [], []>} : vector<8x128xf32>, vector<128x128xf32>, vector<8x128xf32> -> vector<8x128xf32>
    %43 = vector.broadcast %39 : vector<1x128xf32> to vector<8x128xf32>
    %44 = arith.addf %42, %43 : vector<8x128xf32>
    %cst_19 = arith.constant 0.000000e+00 : f32
    %45 = vector.broadcast %cst_19 : f32 to vector<8x128xf32>
    %46 = arith.maximumf %44, %45 : vector<8x128xf32>
    %cst_20 = arith.constant dense<0.000000e+00> : vector<128xf32>
    %47 = vector.multi_reduction <add>, %46, %cst_20 [0] : vector<8x128xf32> to vector<128xf32>
    %48 = vector.shape_cast %47 : vector<128xf32> to vector<1x128xf32>
    %49 = arith.mulf %46, %46 : vector<8x128xf32>
    %cst_21 = arith.constant dense<0.000000e+00> : vector<128xf32>
    %50 = vector.multi_reduction <add>, %49, %cst_21 [0] : vector<8x128xf32> to vector<128xf32>
    %51 = vector.shape_cast %50 : vector<128xf32> to vector<1x128xf32>
    %cst_22 = arith.constant 1.250000e-01 : f32
    %52 = vector.broadcast %cst_22 : f32 to vector<1x128xf32>
    %53 = arith.mulf %48, %52 : vector<1x128xf32>
    %cst_23 = arith.constant 1.250000e-01 : f32
    %54 = vector.broadcast %cst_23 : f32 to vector<1x128xf32>
    %55 = arith.mulf %51, %54 : vector<1x128xf32>
    %56 = arith.mulf %53, %53 : vector<1x128xf32>
    %57 = arith.subf %55, %56 : vector<1x128xf32>
    %cst_24 = arith.constant 0.000000e+00 : f32
    %58 = vector.broadcast %cst_24 : f32 to vector<1x128xf32>
    %59 = arith.maximumf %57, %58 : vector<1x128xf32>
    %cst_25 = arith.constant 9.99999974E-6 : f32
    %60 = vector.broadcast %cst_25 : f32 to vector<1x128xf32>
    %61 = arith.addf %59, %60 : vector<1x128xf32>
    %62 = math.rsqrt %61 : vector<1x128xf32>
    %63 = arith.mulf %40, %62 : vector<1x128xf32>
    %64 = arith.mulf %53, %63 : vector<1x128xf32>
    %65 = arith.subf %41, %64 : vector<1x128xf32>
    %66 = vector.broadcast %63 : vector<1x128xf32> to vector<8x128xf32>
    %67 = arith.mulf %46, %66 : vector<8x128xf32>
    %68 = vector.broadcast %65 : vector<1x128xf32> to vector<8x128xf32>
    %69 = arith.addf %67, %68 : vector<8x128xf32>
    %c0_26 = arith.constant 0 : index
    %c0_27 = arith.constant 0 : index
    %c0_28 = arith.constant 0 : index
    %70 = vector.load %arg4[%c0_26, %c0_27, %c0_28] : memref<1x128x128xf32, #tpu.memory_space<vmem>>, vector<1x128x128xf32>
    %71 = vector.shape_cast %70 : vector<1x128x128xf32> to vector<128x128xf32>
    %72 = vector.extract_strided_slice %1 {offsets = [6, 0], sizes = [1, 128], strides = [1, 1]} : vector<16x128xf32> to vector<1x128xf32>
    %73 = vector.extract_strided_slice %1 {offsets = [7, 0], sizes = [1, 128], strides = [1, 1]} : vector<16x128xf32> to vector<1x128xf32>
    %74 = vector.extract_strided_slice %1 {offsets = [8, 0], sizes = [1, 128], strides = [1, 1]} : vector<16x128xf32> to vector<1x128xf32>
    %cst_29 = arith.constant dense<0.000000e+00> : vector<8x128xf32>
    %75 = tpu.matmul %69, %71, %cst_29 {dimension_numbers = #tpu.dot_dimension_numbers<[1], [0], [0], [1], [0, 0, 1, 1], [], []>} : vector<8x128xf32>, vector<128x128xf32>, vector<8x128xf32> -> vector<8x128xf32>
    %76 = vector.broadcast %72 : vector<1x128xf32> to vector<8x128xf32>
    %77 = arith.addf %75, %76 : vector<8x128xf32>
    %cst_30 = arith.constant 0.000000e+00 : f32
    %78 = vector.broadcast %cst_30 : f32 to vector<8x128xf32>
    %79 = arith.maximumf %77, %78 : vector<8x128xf32>
    %cst_31 = arith.constant dense<0.000000e+00> : vector<128xf32>
    %80 = vector.multi_reduction <add>, %79, %cst_31 [0] : vector<8x128xf32> to vector<128xf32>
    %81 = vector.shape_cast %80 : vector<128xf32> to vector<1x128xf32>
    %82 = arith.mulf %79, %79 : vector<8x128xf32>
    %cst_32 = arith.constant dense<0.000000e+00> : vector<128xf32>
    %83 = vector.multi_reduction <add>, %82, %cst_32 [0] : vector<8x128xf32> to vector<128xf32>
    %84 = vector.shape_cast %83 : vector<128xf32> to vector<1x128xf32>
    %cst_33 = arith.constant 1.250000e-01 : f32
    %85 = vector.broadcast %cst_33 : f32 to vector<1x128xf32>
    %86 = arith.mulf %81, %85 : vector<1x128xf32>
    %cst_34 = arith.constant 1.250000e-01 : f32
    %87 = vector.broadcast %cst_34 : f32 to vector<1x128xf32>
    %88 = arith.mulf %84, %87 : vector<1x128xf32>
    %89 = arith.mulf %86, %86 : vector<1x128xf32>
    %90 = arith.subf %88, %89 : vector<1x128xf32>
    %cst_35 = arith.constant 0.000000e+00 : f32
    %91 = vector.broadcast %cst_35 : f32 to vector<1x128xf32>
    %92 = arith.maximumf %90, %91 : vector<1x128xf32>
    %cst_36 = arith.constant 9.99999974E-6 : f32
    %93 = vector.broadcast %cst_36 : f32 to vector<1x128xf32>
    %94 = arith.addf %92, %93 : vector<1x128xf32>
    %95 = math.rsqrt %94 : vector<1x128xf32>
    %96 = arith.mulf %73, %95 : vector<1x128xf32>
    %97 = arith.mulf %86, %96 : vector<1x128xf32>
    %98 = arith.subf %74, %97 : vector<1x128xf32>
    %99 = vector.broadcast %96 : vector<1x128xf32> to vector<8x128xf32>
    %100 = arith.mulf %79, %99 : vector<8x128xf32>
    %101 = vector.broadcast %98 : vector<1x128xf32> to vector<8x128xf32>
    %102 = arith.addf %100, %101 : vector<8x128xf32>
    %c0_37 = arith.constant 0 : index
    %c0_38 = arith.constant 0 : index
    %c0_39 = arith.constant 0 : index
    %103 = vector.load %arg6[%c0_37, %c0_38, %c0_39] : memref<1x8x128xf32, #tpu.memory_space<vmem>>, vector<1x8x128xf32>
    %104 = vector.shape_cast %103 : vector<1x8x128xf32> to vector<8x128xf32>
    %105 = vector.shape_cast %102 : vector<8x128xf32> to vector<1x8x128xf32>
    tpu.vector_store %arg6[%c0_37, %c0_38, %c0_39], %105 {strides = array<i32>} : memref<1x8x128xf32, #tpu.memory_space<vmem>>, vector<1x8x128xf32>,
    return
  }
  func.func @transform_0(%arg0: i32) -> (i32, i32, i32) {
    %c0_i32 = arith.constant 0 : i32
    %c0_i32_0 = arith.constant 0 : i32
    %c0_i32_1 = arith.constant 0 : i32
    return %arg0, %c0_i32, %c0_i32_0 : i32, i32, i32
  }
  func.func @transform_1(%arg0: i32) -> (i32, i32, i32) {
    %c0_i32 = arith.constant 0 : i32
    %c0_i32_0 = arith.constant 0 : i32
    %c0_i32_1 = arith.constant 0 : i32
    return %arg0, %c0_i32, %c0_i32_0 : i32, i32, i32
  }
  func.func @transform_2(%arg0: i32) -> (i32, i32, i32) {
    %c0_i32 = arith.constant 0 : i32
    %c0_i32_0 = arith.constant 0 : i32
    %c0_i32_1 = arith.constant 0 : i32
    return %arg0, %c0_i32, %c0_i32_0 : i32, i32, i32
  }
  func.func @transform_3(%arg0: i32) -> (i32, i32, i32) {
    %c0_i32 = arith.constant 0 : i32
    %c0_i32_0 = arith.constant 0 : i32
    %c0_i32_1 = arith.constant 0 : i32
    return %arg0, %c0_i32, %c0_i32_0 : i32, i32, i32
  }
  func.func @transform_4(%arg0: i32) -> (i32, i32, i32) {
    %c0_i32 = arith.constant 0 : i32
    %c0_i32_0 = arith.constant 0 : i32
    %c0_i32_1 = arith.constant 0 : i32
    return %arg0, %c0_i32, %c0_i32_0 : i32, i32, i32
  }
  func.func @transform_5(%arg0: i32) -> (i32, i32, i32) {
    %c0_i32 = arith.constant 0 : i32
    %c0_i32_0 = arith.constant 0 : i32
    %c0_i32_1 = arith.constant 0 : i32
    return %arg0, %c0_i32, %c0_i32_0 : i32, i32, i32
  }
}

</mosaic_0001>

<llo_original>
// kernel: tpu_custom_call.1
$region0: #{tpu_custom_call.1}
  #allocation0 [shape = 'u32[]', space=smem, size = 0x4, offset = 0x4, fixed_abs, tag = 'smem constant byte address 0x4 - core index']
  #allocation1 [shape = 'u32[144,128]{1,0:T(1,128)}', space=vmem, size = 0x12000, scoped, tag = 'internal scratch']
  %s0 = inlined_call_operand.hbm [shape: f32[4,8,128], index: 0, kind: input, shape index: {}]
  %s1 = inlined_call_operand.hbm [shape: f32[4,128,128], index: 1, kind: input, shape index: {}]
  %s2 = inlined_call_operand.hbm [shape: f32[4,128,128], index: 2, kind: input, shape index: {}]
  %s3 = inlined_call_operand.hbm [shape: f32[4,128,128], index: 3, kind: input, shape index: {}]
  %s4 = inlined_call_operand.hbm [shape: f32[4,16,128], index: 4, kind: input, shape index: {}]
  %s5 = inlined_call_operand.hbm [shape: f32[4,8,128], index: 5, kind: output, shape index: {}]
  %s6 = sld [smem:[#allocation0]]
  $region73: #{tpu_custom_call.1} parent=0
    _
  %s8 = ssub.s32 1, %s6
  %s9 = scalar_select 0, %s8, %s6
  $region1: #{tpu_custom_call.1} parent=0
    #allocation2 [shape = 'u8[8192]{0}', space=vmem, size = 0x2000, scoped, tag = 'input window, operand 0']
    #allocation3 [shape = 's32[2]{0}', space=sflag, size = 0x8, scoped, tag = 'scoped memory for tpu_custom_call.1']
    #allocation4 [shape = 's32[2]{0}', space=sflag, size = 0x8, scoped, tag = 'scoped memory for tpu_custom_call.1']
    #allocation5 [shape = 'u8[131072]{0}', space=vmem, size = 0x20000, scoped, tag = 'input window, operand 1']
    #allocation6 [shape = 's32[2]{0}', space=sflag, size = 0x8, scoped, tag = 'scoped memory for tpu_custom_call.1']
    #allocation7 [shape = 'u8[131072]{0}', space=vmem, size = 0x20000, scoped, tag = 'input window, operand 2']
    #allocation8 [shape = 'u8[131072]{0}', space=vmem, size = 0x20000, scoped, tag = 'input window, operand 3']
    #allocation9 [shape = 's32[2]{0}', space=sflag, size = 0x8, scoped, tag = 'scoped memory for tpu_custom_call.1']
    #allocation10 [shape = 'u8[16384]{0}', space=vmem, size = 0x4000, scoped, tag = 'input window, operand 4']
    #allocation11 [shape = 'u8[8192]{0}', space=vmem, size = 0x2000, scoped, tag = 'output window, operand 0']
    %10 = vsyncpa [#allocation3], 0
    %s11 = scalar_lea.sflag [#allocation3], 1
    %12 = vsyncpa %s11, 0
    %13 = vsyncpa [#allocation6], 0
    %s14 = scalar_lea.sflag [#allocation6], 1
    %15 = vsyncpa %s14, 0
    %16 = vsyncpa [#allocation9], 0
    %s17 = scalar_lea.sflag [#allocation9], 1
    %18 = vsyncpa %s17, 0
    %19 = vsyncpa [#allocation4], 0
    %s20 = scalar_lea.sflag [#allocation4], 1
    %21 = vsyncpa %s20, 0
    loop: start=0, step=1, limit=6
    $region2: #{tpu_custom_call.1} parent=1 // loop_pre_header
      _
    $region3: #{tpu_custom_call.1} parent=1 // loop_header
      %s23 = sphi 0, %s27
      %p24 = scmp.ge.s32.totalorder %s23, 6
      %s33 = sphi 0, %s35
      %s36 = sphi 0, %s33
      %s37 = sphi 0, %s36
      %s53 = sphi 0, %s37
      %s59 = sphi 0, %s61
      %s62 = sphi 0, %s59
      %s63 = sphi 0, %s62
      %s79 = sphi 0, %s63
      %s85 = sphi 0, %s87
      %s88 = sphi 0, %s85
      %s89 = sphi 0, %s88
      %s105 = sphi 0, %s89
      %s111 = sphi 0, %s113
      %s114 = sphi 0, %s111
      %s115 = sphi 0, %s114
      %s131 = sphi 0, %s115
      %s137 = sphi 0, %s139
      %s140 = sphi 0, %s137
      %s141 = sphi 0, %s140
      %s157 = sphi 0, %s141
      %s163 = sphi 0, %s165
      %s166 = sphi 0, %s163
      %s167 = sphi 0, %s166
      %s183 = sphi 0, %s167
    $region4: #{tpu_custom_call.1} parent=1 // loop_header_branch
      %26 = sbr.rel (%p24) target = $region8
    $region5: #{tpu_custom_call.1} parent=1 // loop_body
      %s28 = ssub.s32 %s23, 1
      %s29 = ssub.s32 %s23, 2
      %s30 = sadd.s32 %s23, 1
      %s31 = ssub.s32 %s23, %s30
      %p32 = scmp.eq.s32.totalorder %s31, 0
      %s34 = sadd.s32 %s33, 1
      %s35 = scalar_select %p32, %s33, %s34
      %p38 = pneg %p32
      %p39 = scmp.eq.s32.totalorder %s23, 3
      %p40 = por %p38, %p39
      %p41 = scmp.ne.s32.totalorder %s33, %s36
      %p42 = scmp.eq.s32.totalorder %s23, 0
      %p43 = por %p41, %p42
      %p44 = scmp.ne.s32.totalorder %s33, %s36
      %p45 = scmp.eq.s32.totalorder %s28, 3
      %p46 = por %p44, %p45
      %p47 = scmp.ne.s32.totalorder %s36, %s37
      %p48 = scmp.eq.s32.totalorder %s28, 0
      %p49 = por %p47, %p48
      %p50 = scmp.ne.s32.totalorder %s36, %s37
      %p51 = scmp.eq.s32.totalorder %s29, 3
      %p52 = por %p50, %p51
      %p54 = scmp.ne.s32.totalorder %s37, %s53
      %p55 = scmp.eq.s32.totalorder %s29, 0
      %p56 = por %p54, %p55
      %s57 = ssub.s32 %s23, %s30
      %p58 = scmp.eq.s32.totalorder %s57, 0
      %s60 = sadd.s32 %s59, 1
      %s61 = scalar_select %p58, %s59, %s60
      %p64 = pneg %p58
      %p65 = scmp.eq.s32.totalorder %s23, 3
      %p66 = por %p64, %p65
      %p67 = scmp.ne.s32.totalorder %s59, %s62
      %p68 = scmp.eq.s32.totalorder %s23, 0
      %p69 = por %p67, %p68
      %p70 = scmp.ne.s32.totalorder %s59, %s62
      %p71 = scmp.eq.s32.totalorder %s28, 3
      %p72 = por %p70, %p71
      %p73 = scmp.ne.s32.totalorder %s62, %s63
      %p74 = scmp.eq.s32.totalorder %s28, 0
      %p75 = por %p73, %p74
      %p76 = scmp.ne.s32.totalorder %s62, %s63
      %p77 = scmp.eq.s32.totalorder %s29, 3
      %p78 = por %p76, %p77
      %p80 = scmp.ne.s32.totalorder %s63, %s79
      %p81 = scmp.eq.s32.totalorder %s29, 0
      %p82 = por %p80, %p81
      %s83 = ssub.s32 %s23, %s30
      %p84 = scmp.eq.s32.totalorder %s83, 0
      %s86 = sadd.s32 %s85, 1
      %s87 = scalar_select %p84, %s85, %s86
      %p90 = pneg %p84
      %p91 = scmp.eq.s32.totalorder %s23, 3
      %p92 = por %p90, %p91
      %p93 = scmp.ne.s32.totalorder %s85, %s88
      %p94 = scmp.eq.s32.totalorder %s23, 0
      %p95 = por %p93, %p94
      %p96 = scmp.ne.s32.totalorder %s85, %s88
      %p97 = scmp.eq.s32.totalorder %s28, 3
      %p98 = por %p96, %p97
      %p99 = scmp.ne.s32.totalorder %s88, %s89
      %p100 = scmp.eq.s32.totalorder %s28, 0
      %p101 = por %p99, %p100
      %p102 = scmp.ne.s32.totalorder %s88, %s89
      %p103 = scmp.eq.s32.totalorder %s29, 3
      %p104 = por %p102, %p103
      %p106 = scmp.ne.s32.totalorder %s89, %s105
      %p107 = scmp.eq.s32.totalorder %s29, 0
      %p108 = por %p106, %p107
      %s109 = ssub.s32 %s23, %s30
      %p110 = scmp.eq.s32.totalorder %s109, 0
      %s112 = sadd.s32 %s111, 1
      %s113 = scalar_select %p110, %s111, %s112
      %p116 = pneg %p110
      %p117 = scmp.eq.s32.totalorder %s23, 3
      %p118 = por %p116, %p117
      %p119 = scmp.ne.s32.totalorder %s111, %s114
      %p120 = scmp.eq.s32.totalorder %s23, 0
      %p121 = por %p119, %p120
      %p122 = scmp.ne.s32.totalorder %s111, %s114
      %p123 = scmp.eq.s32.totalorder %s28, 3
      %p124 = por %p122, %p123
      %p125 = scmp.ne.s32.totalorder %s114, %s115
      %p126 = scmp.eq.s32.totalorder %s28, 0
      %p127 = por %p125, %p126
      %p128 = scmp.ne.s32.totalorder %s114, %s115
      %p129 = scmp.eq.s32.totalorder %s29, 3
      %p130 = por %p128, %p129
      %p132 = scmp.ne.s32.totalorder %s115, %s131
      %p133 = scmp.eq.s32.totalorder %s29, 0
      %p134 = por %p132, %p133
      %s135 = ssub.s32 %s23, %s30
      %p136 = scmp.eq.s32.totalorder %s135, 0
      %s138 = sadd.s32 %s137, 1
      %s139 = scalar_select %p136, %s137, %s138
      %p142 = pneg %p136
      %p143 = scmp.eq.s32.totalorder %s23, 3
      %p144 = por %p142, %p143
      %p145 = scmp.ne.s32.totalorder %s137, %s140
      %p146 = scmp.eq.s32.totalorder %s23, 0
      %p147 = por %p145, %p146
      %p148 = scmp.ne.s32.totalorder %s137, %s140
      %p149 = scmp.eq.s32.totalorder %s28, 3
      %p150 = por %p148, %p149
      %p151 = scmp.ne.s32.totalorder %s140, %s141
      %p152 = scmp.eq.s32.totalorder %s28, 0
      %p153 = por %p151, %p152
      %p154 = scmp.ne.s32.totalorder %s140, %s141
      %p155 = scmp.eq.s32.totalorder %s29, 3
      %p156 = por %p154, %p155
      %p158 = scmp.ne.s32.totalorder %s141, %s157
      %p159 = scmp.eq.s32.totalorder %s29, 0
      %p160 = por %p158, %p159
      %s161 = ssub.s32 %s23, %s30
      %p162 = scmp.eq.s32.totalorder %s161, 0
      %s164 = sadd.s32 %s163, 1
      %s165 = scalar_select %p162, %s163, %s164
      %p168 = pneg %p162
      %p169 = scmp.eq.s32.totalorder %s23, 3
      %p170 = por %p168, %p169
      %p171 = scmp.ne.s32.totalorder %s163, %s166
      %p172 = scmp.eq.s32.totalorder %s23, 0
      %p173 = por %p171, %p172
      %p174 = scmp.ne.s32.totalorder %s163, %s166
      %p175 = scmp.eq.s32.totalorder %s28, 3
      %p176 = por %p174, %p175
      %p177 = scmp.ne.s32.totalorder %s166, %s167
      %p178 = scmp.eq.s32.totalorder %s28, 0
      %p179 = por %p177, %p178
      %p180 = scmp.ne.s32.totalorder %s166, %s167
      %p181 = scmp.eq.s32.totalorder %s29, 3
      %p182 = por %p180, %p181
      %p184 = scmp.ne.s32.totalorder %s167, %s183
      %p185 = scmp.eq.s32.totalorder %s29, 0
      %p186 = por %p184, %p185
      %p187 = scmp.le.s32.totalorder 1, %s23
      %p188 = scmp.lt.s32.totalorder %s23, 5
      %p189 = pnand %p187, %p188
      %p190 = pneg %p189
      // Predicated region
      $region9: #{tpu_custom_call.1} parent=5 // pred_check
        _
      $region10: #{tpu_custom_call.1} parent=5 // pred_check_branch
        %192 = sbr.rel (%p189) target = $region12
      $region11: #{tpu_custom_call.1} parent=5 // pred_region
        %s193 = ssub.s32 %s23, 1
      $region12: #{tpu_custom_call.1} parent=5 // pred_fallthru
        _
      %p194 = scmp.lt.s32.totalorder %s23, 4
      // Predicated region
      $region13: #{tpu_custom_call.1} parent=5 // pred_check
        %p195 = pneg %p194
      $region14: #{tpu_custom_call.1} parent=5 // pred_check_branch
        %197 = sbr.rel (%p195) target = $region16
      $region15: #{tpu_custom_call.1} parent=5 // pred_region
        // Predicated region
        $region17: #{tpu_custom_call.1} parent=15 // pred_check
          %p198 = pneg %p43
        $region18: #{tpu_custom_call.1} parent=15 // pred_check_branch
          %200 = sbr.rel (%p198) target = $region20
        $region19: #{tpu_custom_call.1} parent=15 // pred_region
          %s201 = sand.u32 %s33, 1
          %s202 = scalar_lea.sflag [#allocation3], %s201
          %s203 = sand.u32 %s33, 1
          %s204 = smul.addr %s203, 8
          %s205 = scalar_lea.vmem [#allocation2], %s204
          %s207 = ssub.s32 128, 128
          %208 = vsyncadd %s202, %s207
          %s209 = smul.addr %s23, 128
          %s210 = scalar_lea.hbm %s0, %s209
          %s212 = sshll.u32 %s205, 4
          %s213 = int_to_ptr.vmem [resolvable:$true] %s212
          %215 = dma.hbm_to_vmem [thread:$0]  %s210, 128, %s213, %s202
        $region20: #{tpu_custom_call.1} parent=15 // pred_fallthru
          _
        // Predicated region
        $region21: #{tpu_custom_call.1} parent=15 // pred_check
          %p216 = pneg %p69
        $region22: #{tpu_custom_call.1} parent=15 // pred_check_branch
          %218 = sbr.rel (%p216) target = $region24
        $region23: #{tpu_custom_call.1} parent=15 // pred_region
          %s219 = sand.u32 %s23, 1
          %s220 = scalar_lea.sflag [#allocation6], %s219
          %s221 = sand.u32 %s59, 1
          %s222 = smul.addr %s221, 128
          %s223 = scalar_lea.vmem [#allocation5], %s222
          %s225 = ssub.s32 2048, 2048
          %226 = vsyncadd %s220, %s225
          %s227 = smul.addr %s23, 16
          %s228 = smul.addr %s227, 128
          %s229 = scalar_lea.hbm %s1, %s228
          %s230 = sshll.u32 %s223, 4
          %s231 = int_to_ptr.vmem [resolvable:$true] %s230
          %236 = dma.hbm_to_vmem [thread:$0]  %s229, 2048, %s231, %s220, 128, 128, 8
        $region24: #{tpu_custom_call.1} parent=15 // pred_fallthru
          _
        // Predicated region
        $region25: #{tpu_custom_call.1} parent=15 // pred_check
          %p237 = pneg %p95
        $region26: #{tpu_custom_call.1} parent=15 // pred_check_branch
          %239 = sbr.rel (%p237) target = $region28
        $region27: #{tpu_custom_call.1} parent=15 // pred_region
          %s240 = sand.u32 %s23, 1
          %s241 = scalar_lea.sflag [#allocation6], %s240
          %s242 = sand.u32 %s85, 1
          %s243 = smul.addr %s242, 128
          %s244 = scalar_lea.vmem [#allocation7], %s243
          %s246 = ssub.s32 2048, 2048
          %247 = vsyncadd %s241, %s246
          %s248 = smul.addr %s23, 16
          %s249 = smul.addr %s248, 128
          %s250 = scalar_lea.hbm %s2, %s249
          %s251 = sshll.u32 %s244, 4
          %s252 = int_to_ptr.vmem [resolvable:$true] %s251
          %257 = dma.hbm_to_vmem [thread:$0]  %s250, 2048, %s252, %s241, 128, 128, 8
        $region28: #{tpu_custom_call.1} parent=15 // pred_fallthru
          _
        // Predicated region
        $region29: #{tpu_custom_call.1} parent=15 // pred_check
          %p258 = pneg %p121
        $region30: #{tpu_custom_call.1} parent=15 // pred_check_branch
          %260 = sbr.rel (%p258) target = $region32
        $region31: #{tpu_custom_call.1} parent=15 // pred_region
          %s261 = sand.u32 %s23, 1
          %s262 = scalar_lea.sflag [#allocation9], %s261
          %s263 = sand.u32 %s111, 1
          %s264 = smul.addr %s263, 128
          %s265 = scalar_lea.vmem [#allocation8], %s264
          %s267 = ssub.s32 2048, 2048
          %268 = vsyncadd %s262, %s267
          %s269 = smul.addr %s23, 16
          %s270 = smul.addr %s269, 128
          %s271 = scalar_lea.hbm %s3, %s270
          %s272 = sshll.u32 %s265, 4
          %s273 = int_to_ptr.vmem [resolvable:$true] %s272
          %278 = dma.hbm_to_vmem [thread:$0]  %s271, 2048, %s273, %s262, 128, 128, 8
        $region32: #{tpu_custom_call.1} parent=15 // pred_fallthru
          _
        // Predicated region
        $region33: #{tpu_custom_call.1} parent=15 // pred_check
          %p279 = pneg %p147
        $region34: #{tpu_custom_call.1} parent=15 // pred_check_branch
          %281 = sbr.rel (%p279) target = $region36
        $region35: #{tpu_custom_call.1} parent=15 // pred_region
          %s282 = sand.u32 %s23, 1
          %s283 = scalar_lea.sflag [#allocation9], %s282
          %s284 = sand.u32 %s137, 1
          %s285 = smul.addr %s284, 16
          %s286 = scalar_lea.vmem [#allocation10], %s285
          %s288 = ssub.s32 256, 256
          %289 = vsyncadd %s283, %s288
          %s290 = smul.addr %s23, 2
          %s291 = smul.addr %s290, 128
          %s292 = scalar_lea.hbm %s4, %s291
          %s293 = sshll.u32 %s286, 4
          %s294 = int_to_ptr.vmem [resolvable:$true] %s293
          %299 = dma.hbm_to_vmem [thread:$0]  %s292, 256, %s294, %s283, 128, 128, 8
        $region36: #{tpu_custom_call.1} parent=15 // pred_fallthru
          _
      $region16: #{tpu_custom_call.1} parent=5 // pred_fallthru
        _
      %p300 = scmp.le.s32.totalorder 1, %s23
      %p301 = scmp.lt.s32.totalorder %s23, 5
      %p302 = pnand %p300, %p301
      %p303 = pneg %p302
      // Predicated region
      $region37: #{tpu_custom_call.1} parent=5 // pred_check
        _
      $region38: #{tpu_custom_call.1} parent=5 // pred_check_branch
        %305 = sbr.rel (%p302) target = $region40
      $region39: #{tpu_custom_call.1} parent=5 // pred_region
        %s306 = ssub.s32 %s23, 1
        %s307 = sand.u32 %s36, 1
        %s308 = scalar_lea.sflag [#allocation3], %s307
        %s309 = sand.u32 %s36, 1
        %s310 = smul.addr %s309, 8
        %s311 = scalar_lea.vmem [#allocation2], %s310
        // Predicated region
        $region41: #{tpu_custom_call.1} parent=39 // pred_check
          %p312 = pneg %p49
        $region42: #{tpu_custom_call.1} parent=39 // pred_check_branch
          %314 = sbr.rel (%p312) target = $region44
        $region43: #{tpu_custom_call.1} parent=39 // pred_region
          %315 = dma.done %s308, 128
        $region44: #{tpu_custom_call.1} parent=39 // pred_fallthru
          _
        %s316 = sand.u32 %s28, 1
        %s317 = scalar_lea.sflag [#allocation6], %s316
        %s318 = sand.u32 %s62, 1
        %s319 = smul.addr %s318, 128
        %s320 = scalar_lea.vmem [#allocation5], %s319
        // Predicated region
        $region45: #{tpu_custom_call.1} parent=39 // pred_check
          %p321 = pneg %p75
        $region46: #{tpu_custom_call.1} parent=39 // pred_check_branch
          %323 = sbr.rel (%p321) target = $region48
        $region47: #{tpu_custom_call.1} parent=39 // pred_region
          %324 = dma.done %s317, 2048
        $region48: #{tpu_custom_call.1} parent=39 // pred_fallthru
          _
        %s325 = sand.u32 %s28, 1
        %s326 = scalar_lea.sflag [#allocation6], %s325
        %s327 = sand.u32 %s88, 1
        %s328 = smul.addr %s327, 128
        %s329 = scalar_lea.vmem [#allocation7], %s328
        // Predicated region
        $region49: #{tpu_custom_call.1} parent=39 // pred_check
          %p330 = pneg %p101
        $region50: #{tpu_custom_call.1} parent=39 // pred_check_branch
          %332 = sbr.rel (%p330) target = $region52
        $region51: #{tpu_custom_call.1} parent=39 // pred_region
          %333 = dma.done %s326, 2048
        $region52: #{tpu_custom_call.1} parent=39 // pred_fallthru
          _
        %s334 = sand.u32 %s28, 1
        %s335 = scalar_lea.sflag [#allocation9], %s334
        %s336 = sand.u32 %s114, 1
        %s337 = smul.addr %s336, 128
        %s338 = scalar_lea.vmem [#allocation8], %s337
        // Predicated region
        $region53: #{tpu_custom_call.1} parent=39 // pred_check
          %p339 = pneg %p127
        $region54: #{tpu_custom_call.1} parent=39 // pred_check_branch
          %341 = sbr.rel (%p339) target = $region56
        $region55: #{tpu_custom_call.1} parent=39 // pred_region
          %342 = dma.done %s335, 2048
        $region56: #{tpu_custom_call.1} parent=39 // pred_fallthru
          _
        %s343 = sand.u32 %s28, 1
        %s344 = scalar_lea.sflag [#allocation9], %s343
        %s345 = sand.u32 %s140, 1
        %s346 = smul.addr %s345, 16
        %s347 = scalar_lea.vmem [#allocation10], %s346
        // Predicated region
        $region57: #{tpu_custom_call.1} parent=39 // pred_check
          %p348 = pneg %p153
        $region58: #{tpu_custom_call.1} parent=39 // pred_check_branch
          %350 = sbr.rel (%p348) target = $region60
        $region59: #{tpu_custom_call.1} parent=39 // pred_region
          %351 = dma.done %s344, 256
        $region60: #{tpu_custom_call.1} parent=39 // pred_fallthru
          _
        %s352 = sand.u32 %s36, 1
        %s353 = scalar_lea.sflag [#allocation3], %s352
        %s354 = sand.u32 %s36, 1
        %s355 = smul.addr %s354, 8
        %s356 = scalar_lea.vmem [#allocation2], %s355
        %p357 = pneg %p49
        %p358 = pneg %p46
        %s359 = sand.u32 %s28, 1
        %s360 = scalar_lea.sflag [#allocation6], %s359
        %s361 = sand.u32 %s62, 1
        %s362 = smul.addr %s361, 128
        %s363 = scalar_lea.vmem [#allocation5], %s362
        %p364 = pneg %p75
        %p365 = pneg %p72
        %s366 = sand.u32 %s28, 1
        %s367 = scalar_lea.sflag [#allocation6], %s366
        %s368 = sand.u32 %s88, 1
        %s369 = smul.addr %s368, 128
        %s370 = scalar_lea.vmem [#allocation7], %s369
        %p371 = pneg %p101
        %p372 = pneg %p98
        %s373 = sand.u32 %s28, 1
        %s374 = scalar_lea.sflag [#allocation9], %s373
        %s375 = sand.u32 %s114, 1
        %s376 = smul.addr %s375, 128
        %s377 = scalar_lea.vmem [#allocation8], %s376
        %p378 = pneg %p127
        %p379 = pneg %p124
        %s380 = sand.u32 %s28, 1
        %s381 = scalar_lea.sflag [#allocation9], %s380
        %s382 = sand.u32 %s140, 1
        %s383 = smul.addr %s382, 16
        %s384 = scalar_lea.vmem [#allocation10], %s383
        %p385 = pneg %p153
        %p386 = pneg %p150
        %p387 = pneg %p179
        %p388 = pneg %p176
        %s389 = sand.u32 %s166, 1
        %s390 = scalar_lea.sflag [#allocation4], %s389
        %s391 = sand.u32 %s166, 1
        %s392 = smul.addr %s391, 8
        %s393 = scalar_lea.vmem [#allocation11], %s392
        %v394 = vld [vmem:[%s347] sm:$0xff]
        %v395 = vld [vmem:[%s347 + $0x8] sm:$0xff]
        %v396 = vld [vmem:[%s311] sm:$0xff]
        %v397 = vld [vmem:[%s320] sm:$0xff]
        %v398 = vld [vmem:[%s320 + $0x8] sm:$0xff]
        %v399 = vld [vmem:[%s320 + $0x10] sm:$0xff]
        %v400 = vld [vmem:[%s320 + $0x18] sm:$0xff]
        %v401 = vld [vmem:[%s320 + $0x20] sm:$0xff]
        %v402 = vld [vmem:[%s320 + $0x28] sm:$0xff]
        %v403 = vld [vmem:[%s320 + $0x30] sm:$0xff]
        %v404 = vld [vmem:[%s320 + $0x38] sm:$0xff]
        %v405 = vld [vmem:[%s320 + $0x40] sm:$0xff]
        %v406 = vld [vmem:[%s320 + $0x48] sm:$0xff]
        %v407 = vld [vmem:[%s320 + $0x50] sm:$0xff]
        %v408 = vld [vmem:[%s320 + $0x58] sm:$0xff]
        %v409 = vld [vmem:[%s320 + $0x60] sm:$0xff]
        %v410 = vld [vmem:[%s320 + $0x68] sm:$0xff]
        %v411 = vld [vmem:[%s320 + $0x70] sm:$0xff]
        %v412 = vld [vmem:[%s320 + $0x78] sm:$0xff]
        %v413 = vlaneseq
        %v414 = vshrl.u32 %v413, 7
        %v415 = vsub.s32 0, %v414
        %v416 = vrot.slane %v394, %v415
        %417 = vmatprep.subr.mxu0 0.0
        %418 = vmatpush1.msra.mxu0 %v397
        %419 = vmatprep.subr.mxu0 0.0
        %420 = vmatpush1.msra.mxu0 %v398
        %421 = vmatprep.subr.mxu0 0.0
        %422 = vmatpush1.msra.mxu0 %v399
        %423 = vmatprep.subr.mxu0 0.0
        %424 = vmatpush1.msra.mxu0 %v400
        %425 = vmatprep.subr.mxu0 0.0
        %426 = vmatpush1.msra.mxu0 %v401
        %427 = vmatprep.subr.mxu0 0.0
        %428 = vmatpush1.msra.mxu0 %v402
        %429 = vmatprep.subr.mxu0 0.0
        %430 = vmatpush1.msra.mxu0 %v403
        %431 = vmatprep.subr.mxu0 0.0
        %432 = vmatpush1.msra.mxu0 %v404
        %433 = vmatprep.subr.mxu0 0.0
        %434 = vmatpush1.msra.mxu0 %v405
        %435 = vmatprep.subr.mxu0 0.0
        %436 = vmatpush1.msra.mxu0 %v406
        %437 = vmatprep.subr.mxu0 0.0
        %438 = vmatpush1.msra.mxu0 %v407
        %439 = vmatprep.subr.mxu0 0.0
        %440 = vmatpush1.msra.mxu0 %v408
        %441 = vmatprep.subr.mxu0 0.0
        %442 = vmatpush1.msra.mxu0 %v409
        %443 = vmatprep.subr.mxu0 0.0
        %444 = vmatpush1.msra.mxu0 %v410
        %445 = vmatprep.subr.mxu0 0.0
        %446 = vmatpush1.msra.mxu0 %v411
        %447 = vmatprep.subr.mxu0 0.0
        %448 = vmatpush1.msra.mxu0 %v412
        %449 = vmatprep.subr.mxu0 0.0
        %450 = vmatpush1.msra.mxu0 0.0
        %451 = vmatprep.subr.mxu0 0.0
        %452 = vmatpush1.msra.mxu0 0.0
        %453 = vmatprep.subr.mxu0 0.0
        %454 = vmatpush1.msra.mxu0 0.0
        %455 = vmatprep.subr.mxu0 0.0
        %456 = vmatpush1.msra.mxu0 0.0
        %457 = vmatprep.subr.mxu0 0.0
        %458 = vmatpush1.msra.mxu0 0.0
        %459 = vmatprep.subr.mxu0 0.0
        %460 = vmatpush1.msra.mxu0 0.0
        %461 = vmatprep.subr.mxu0 0.0
        %462 = vmatpush1.msra.mxu0 0.0
        %463 = vmatprep.subr.mxu0 0.0
        %464 = vmatpush1.msra.mxu0 0.0
        %465 = vmatprep.subr.mxu0 0.0
        %466 = vmatpush1.msra.mxu0 0.0
        %467 = vmatprep.subr.mxu0 0.0
        %468 = vmatpush1.msra.mxu0 0.0
        %469 = vmatprep.subr.mxu0 0.0
        %470 = vmatpush1.msra.mxu0 0.0
        %471 = vmatprep.subr.mxu0 0.0
        %472 = vmatpush1.msra.mxu0 0.0
        %473 = vmatprep.subr.mxu0 0.0
        %474 = vmatpush1.msra.mxu0 0.0
        %475 = vmatprep.subr.mxu0 0.0
        %476 = vmatpush1.msra.mxu0 0.0
        %477 = vmatprep.subr.mxu0 0.0
        %478 = vmatpush1.msra.mxu0 0.0
        %479 = vmatprep.subr.mxu0 0.0
        %480 = vmatpush1.msra.mxu0 0.0
        %481 = vmatprep.mubr.f32.mxu0 0.0
        %482 = vmatmul.mubr.f32.gmra.mrb[0].mxu0 %v396
        %v483 = vpop.f32.mrb[0].mxu0
        %v484 = vadd.f32 %v416, %v483
        %v485 = vpop.f32.mrb[0].mxu0
        %486 = vdwg.mxu0
        %v487 = vmax.f32 %v484, 0.0
        %v488 = vrot.slane %v487, 4
        %v489 = vadd.f32 %v487, %v488
        %v490 = vrot.slane %v489, 2
        %v491 = vadd.f32 %v489, %v490
        %v492 = vrot.slane %v491, 1
        %v493 = vadd.f32 %v491, %v492
        %v494 = vmul.f32 %v487, %v487
        %v495 = vrot.slane %v494, 4
        %v496 = vadd.f32 %v494, %v495
        %v497 = vrot.slane %v496, 2
        %v498 = vadd.f32 %v496, %v497
        %v499 = vrot.slane %v498, 1
        %v500 = vadd.f32 %v498, %v499
        %v501 = vmul.f32 %v493, 0.125
        %v502 = vmul.f32 %v500, 0.125
        %v503 = vmul.f32 %v501, %v501
        %v504 = vsub.f32 %v502, %v503
        %v505 = vmax.f32 %v504, 0.0
        %v506 = vadd.f32 %v505, 1e-05
        %v507 = vrsqrt.pop %v506
        %v508 = vmul.f32 %v394, %v507
        %v509 = vmul.f32 %v501, %v508
        %v511 = vrot.slane %v509, 7
        %v513 = vsub.f32 %v394, %v511
        %v514 = vlaneseq
        %v515 = vshrl.u32 %v514, 7
        %v516 = vsub.s32 1, %v515
        %v517 = vrot.slane %v508, %v516
        %v518 = vmul.f32 %v487, %v517
        %v519 = vlaneseq
        %v520 = vshrl.u32 %v519, 7
        %v521 = vsub.s32 2, %v520
        %v522 = vrot.slane %v513, %v521
        %v523 = vadd.f32 %v518, %v522
        %v524 = vld [vmem:[%s329] sm:$0xff]
        %v525 = vld [vmem:[%s329 + $0x8] sm:$0xff]
        %v526 = vld [vmem:[%s329 + $0x10] sm:$0xff]
        %v527 = vld [vmem:[%s329 + $0x18] sm:$0xff]
        %v528 = vld [vmem:[%s329 + $0x20] sm:$0xff]
        %v529 = vld [vmem:[%s329 + $0x28] sm:$0xff]
        %v530 = vld [vmem:[%s329 + $0x30] sm:$0xff]
        %v531 = vld [vmem:[%s329 + $0x38] sm:$0xff]
        %v532 = vld [vmem:[%s329 + $0x40] sm:$0xff]
        %v533 = vld [vmem:[%s329 + $0x48] sm:$0xff]
        %v534 = vld [vmem:[%s329 + $0x50] sm:$0xff]
        %v535 = vld [vmem:[%s329 + $0x58] sm:$0xff]
        %v536 = vld [vmem:[%s329 + $0x60] sm:$0xff]
        %v537 = vld [vmem:[%s329 + $0x68] sm:$0xff]
        %v538 = vld [vmem:[%s329 + $0x70] sm:$0xff]
        %v539 = vld [vmem:[%s329 + $0x78] sm:$0xff]
        %v540 = vlaneseq
        %v541 = vshrl.u32 %v540, 7
        %v542 = vsub.s32 3, %v541
        %v543 = vrot.slane %v394, %v542
        %544 = vmatprep.subr.mxu0 0.0
        %545 = vmatpush1.msra.mxu0 %v524
        %546 = vmatprep.subr.mxu0 0.0
        %547 = vmatpush1.msra.mxu0 %v525
        %548 = vmatprep.subr.mxu0 0.0
        %549 = vmatpush1.msra.mxu0 %v526
        %550 = vmatprep.subr.mxu0 0.0
        %551 = vmatpush1.msra.mxu0 %v527
        %552 = vmatprep.subr.mxu0 0.0
        %553 = vmatpush1.msra.mxu0 %v528
        %554 = vmatprep.subr.mxu0 0.0
        %555 = vmatpush1.msra.mxu0 %v529
        %556 = vmatprep.subr.mxu0 0.0
        %557 = vmatpush1.msra.mxu0 %v530
        %558 = vmatprep.subr.mxu0 0.0
        %559 = vmatpush1.msra.mxu0 %v531
        %560 = vmatprep.subr.mxu0 0.0
        %561 = vmatpush1.msra.mxu0 %v532
        %562 = vmatprep.subr.mxu0 0.0
        %563 = vmatpush1.msra.mxu0 %v533
        %564 = vmatprep.subr.mxu0 0.0
        %565 = vmatpush1.msra.mxu0 %v534
        %566 = vmatprep.subr.mxu0 0.0
        %567 = vmatpush1.msra.mxu0 %v535
        %568 = vmatprep.subr.mxu0 0.0
        %569 = vmatpush1.msra.mxu0 %v536
        %570 = vmatprep.subr.mxu0 0.0
        %571 = vmatpush1.msra.mxu0 %v537
        %572 = vmatprep.subr.mxu0 0.0
        %573 = vmatpush1.msra.mxu0 %v538
        %574 = vmatprep.subr.mxu0 0.0
        %575 = vmatpush1.msra.mxu0 %v539
        %576 = vmatprep.subr.mxu0 0.0
        %577 = vmatpush1.msra.mxu0 0.0
        %578 = vmatprep.subr.mxu0 0.0
        %579 = vmatpush1.msra.mxu0 0.0
        %580 = vmatprep.subr.mxu0 0.0
        %581 = vmatpush1.msra.mxu0 0.0
        %582 = vmatprep.subr.mxu0 0.0
        %583 = vmatpush1.msra.mxu0 0.0
        %584 = vmatprep.subr.mxu0 0.0
        %585 = vmatpush1.msra.mxu0 0.0
        %586 = vmatprep.subr.mxu0 0.0
        %587 = vmatpush1.msra.mxu0 0.0
        %588 = vmatprep.subr.mxu0 0.0
        %589 = vmatpush1.msra.mxu0 0.0
        %590 = vmatprep.subr.mxu0 0.0
        %591 = vmatpush1.msra.mxu0 0.0
        %592 = vmatprep.subr.mxu0 0.0
        %593 = vmatpush1.msra.mxu0 0.0
        %594 = vmatprep.subr.mxu0 0.0
        %595 = vmatpush1.msra.mxu0 0.0
        %596 = vmatprep.subr.mxu0 0.0
        %597 = vmatpush1.msra.mxu0 0.0
        %598 = vmatprep.subr.mxu0 0.0
        %599 = vmatpush1.msra.mxu0 0.0
        %600 = vmatprep.subr.mxu0 0.0
        %601 = vmatpush1.msra.mxu0 0.0
        %602 = vmatprep.subr.mxu0 0.0
        %603 = vmatpush1.msra.mxu0 0.0
        %604 = vmatprep.subr.mxu0 0.0
        %605 = vmatpush1.msra.mxu0 0.0
        %606 = vmatprep.subr.mxu0 0.0
        %607 = vmatpush1.msra.mxu0 0.0
        %608 = vmatprep.mubr.f32.mxu0 0.0
        %609 = vmatmul.mubr.f32.gmra.mrb[0].mxu0 %v523
        %v610 = vpop.f32.mrb[0].mxu0
        %v611 = vadd.f32 %v543, %v610
        %v612 = vpop.f32.mrb[0].mxu0
        %613 = vdwg.mxu0
        %v614 = vmax.f32 %v611, 0.0
        %v615 = vrot.slane %v614, 4
        %v616 = vadd.f32 %v614, %v615
        %v617 = vrot.slane %v616, 2
        %v618 = vadd.f32 %v616, %v617
        %v619 = vrot.slane %v618, 1
        %v620 = vadd.f32 %v618, %v619
        %v621 = vmul.f32 %v614, %v614
        %v622 = vrot.slane %v621, 4
        %v623 = vadd.f32 %v621, %v622
        %v624 = vrot.slane %v623, 2
        %v625 = vadd.f32 %v623, %v624
        %v626 = vrot.slane %v625, 1
        %v627 = vadd.f32 %v625, %v626
        %v628 = vmul.f32 %v620, 0.125
        %v629 = vmul.f32 %v627, 0.125
        %v630 = vmul.f32 %v628, %v628
        %v631 = vsub.f32 %v629, %v630
        %v632 = vmax.f32 %v631, 0.0
        %v633 = vadd.f32 %v632, 1e-05
        %v634 = vrsqrt.pop %v633
        %v635 = vmul.f32 %v394, %v634
        %v636 = vmul.f32 %v628, %v635
        %v638 = vrot.slane %v636, 7
        %v640 = vsub.f32 %v394, %v638
        %v641 = vlaneseq
        %v642 = vshrl.u32 %v641, 7
        %v643 = vsub.s32 4, %v642
        %v644 = vrot.slane %v635, %v643
        %v645 = vmul.f32 %v614, %v644
        %v646 = vlaneseq
        %v647 = vshrl.u32 %v646, 7
        %v648 = vsub.s32 5, %v647
        %v649 = vrot.slane %v640, %v648
        %v650 = vadd.f32 %v645, %v649
        %v651 = vld [vmem:[%s338] sm:$0xff]
        %v652 = vld [vmem:[%s338 + $0x8] sm:$0xff]
        %v653 = vld [vmem:[%s338 + $0x10] sm:$0xff]
        %v654 = vld [vmem:[%s338 + $0x18] sm:$0xff]
        %v655 = vld [vmem:[%s338 + $0x20] sm:$0xff]
        %v656 = vld [vmem:[%s338 + $0x28] sm:$0xff]
        %v657 = vld [vmem:[%s338 + $0x30] sm:$0xff]
        %v658 = vld [vmem:[%s338 + $0x38] sm:$0xff]
        %v659 = vld [vmem:[%s338 + $0x40] sm:$0xff]
        %v660 = vld [vmem:[%s338 + $0x48] sm:$0xff]
        %v661 = vld [vmem:[%s338 + $0x50] sm:$0xff]
        %v662 = vld [vmem:[%s338 + $0x58] sm:$0xff]
        %v663 = vld [vmem:[%s338 + $0x60] sm:$0xff]
        %v664 = vld [vmem:[%s338 + $0x68] sm:$0xff]
        %v665 = vld [vmem:[%s338 + $0x70] sm:$0xff]
        %v666 = vld [vmem:[%s338 + $0x78] sm:$0xff]
        %v667 = vlaneseq
        %v668 = vshrl.u32 %v667, 7
        %v669 = vsub.s32 6, %v668
        %v670 = vrot.slane %v394, %v669
        %671 = vmatprep.subr.mxu0 0.0
        %672 = vmatpush1.msra.mxu0 %v651
        %673 = vmatprep.subr.mxu0 0.0
        %674 = vmatpush1.msra.mxu0 %v652
        %675 = vmatprep.subr.mxu0 0.0
        %676 = vmatpush1.msra.mxu0 %v653
        %677 = vmatprep.subr.mxu0 0.0
        %678 = vmatpush1.msra.mxu0 %v654
        %679 = vmatprep.subr.mxu0 0.0
        %680 = vmatpush1.msra.mxu0 %v655
        %681 = vmatprep.subr.mxu0 0.0
        %682 = vmatpush1.msra.mxu0 %v656
        %683 = vmatprep.subr.mxu0 0.0
        %684 = vmatpush1.msra.mxu0 %v657
        %685 = vmatprep.subr.mxu0 0.0
        %686 = vmatpush1.msra.mxu0 %v658
        %687 = vmatprep.subr.mxu0 0.0
        %688 = vmatpush1.msra.mxu0 %v659
        %689 = vmatprep.subr.mxu0 0.0
        %690 = vmatpush1.msra.mxu0 %v660
        %691 = vmatprep.subr.mxu0 0.0
        %692 = vmatpush1.msra.mxu0 %v661
        %693 = vmatprep.subr.mxu0 0.0
        %694 = vmatpush1.msra.mxu0 %v662
        %695 = vmatprep.subr.mxu0 0.0
        %696 = vmatpush1.msra.mxu0 %v663
        %697 = vmatprep.subr.mxu0 0.0
        %698 = vmatpush1.msra.mxu0 %v664
        %699 = vmatprep.subr.mxu0 0.0
        %700 = vmatpush1.msra.mxu0 %v665
        %701 = vmatprep.subr.mxu0 0.0
        %702 = vmatpush1.msra.mxu0 %v666
        %703 = vmatprep.subr.mxu0 0.0
        %704 = vmatpush1.msra.mxu0 0.0
        %705 = vmatprep.subr.mxu0 0.0
        %706 = vmatpush1.msra.mxu0 0.0
        %707 = vmatprep.subr.mxu0 0.0
        %708 = vmatpush1.msra.mxu0 0.0
        %709 = vmatprep.subr.mxu0 0.0
        %710 = vmatpush1.msra.mxu0 0.0
        %711 = vmatprep.subr.mxu0 0.0
        %712 = vmatpush1.msra.mxu0 0.0
        %713 = vmatprep.subr.mxu0 0.0
        %714 = vmatpush1.msra.mxu0 0.0
        %715 = vmatprep.subr.mxu0 0.0
        %716 = vmatpush1.msra.mxu0 0.0
        %717 = vmatprep.subr.mxu0 0.0
        %718 = vmatpush1.msra.mxu0 0.0
        %719 = vmatprep.subr.mxu0 0.0
        %720 = vmatpush1.msra.mxu0 0.0
        %721 = vmatprep.subr.mxu0 0.0
        %722 = vmatpush1.msra.mxu0 0.0
        %723 = vmatprep.subr.mxu0 0.0
        %724 = vmatpush1.msra.mxu0 0.0
        %725 = vmatprep.subr.mxu0 0.0
        %726 = vmatpush1.msra.mxu0 0.0
        %727 = vmatprep.subr.mxu0 0.0
        %728 = vmatpush1.msra.mxu0 0.0
        %729 = vmatprep.subr.mxu0 0.0
        %730 = vmatpush1.msra.mxu0 0.0
        %731 = vmatprep.subr.mxu0 0.0
        %732 = vmatpush1.msra.mxu0 0.0
        %733 = vmatprep.subr.mxu0 0.0
        %734 = vmatpush1.msra.mxu0 0.0
        %735 = vmatprep.mubr.f32.mxu0 0.0
        %736 = vmatmul.mubr.f32.gmra.mrb[0].mxu0 %v650
        %v737 = vpop.f32.mrb[0].mxu0
        %v738 = vadd.f32 %v670, %v737
        %v739 = vpop.f32.mrb[0].mxu0
        %740 = vdwg.mxu0
        %v741 = vmax.f32 %v738, 0.0
        %v742 = vrot.slane %v741, 4
        %v743 = vadd.f32 %v741, %v742
        %v744 = vrot.slane %v743, 2
        %v745 = vadd.f32 %v743, %v744
        %v746 = vrot.slane %v745, 1
        %v747 = vadd.f32 %v745, %v746
        %v748 = vmul.f32 %v741, %v741
        %v749 = vrot.slane %v748, 4
        %v750 = vadd.f32 %v748, %v749
        %v751 = vrot.slane %v750, 2
        %v752 = vadd.f32 %v750, %v751
        %v753 = vrot.slane %v752, 1
        %v754 = vadd.f32 %v752, %v753
        %v755 = vmul.f32 %v747, 0.125
        %v756 = vmul.f32 %v754, 0.125
        %v757 = vmul.f32 %v755, %v755
        %v758 = vsub.f32 %v756, %v757
        %v759 = vmax.f32 %v758, 0.0
        %v760 = vadd.f32 %v759, 1e-05
        %v761 = vrsqrt.pop %v760
        %v762 = vmul.f32 %v394, %v761
        %v763 = vmul.f32 %v755, %v762
        %v765 = vrot.slane %v763, 7
        %v767 = vsub.f32 %v395, %v765
        %v768 = vlaneseq
        %v769 = vshrl.u32 %v768, 7
        %v770 = vsub.s32 7, %v769
        %v771 = vrot.slane %v762, %v770
        %v772 = vmul.f32 %v741, %v771
        %v773 = vlaneseq
        %v774 = vshrl.u32 %v773, 7
        %v775 = vsub.s32 0, %v774
        %v776 = vrot.slane %v767, %v775
        %v777 = vadd.f32 %v772, %v776
        %778 = vst [vmem:[%s393] sm:$0xff] %v777
        %s779 = sand.u32 %s166, 1
        %s780 = scalar_lea.sflag [#allocation4], %s779
        %s781 = sand.u32 %s166, 1
        %s782 = smul.addr %s781, 8
        %s783 = scalar_lea.vmem [#allocation11], %s782
        // Predicated region
        $region61: #{tpu_custom_call.1} parent=39 // pred_check
          %p784 = pneg %p176
        $region62: #{tpu_custom_call.1} parent=39 // pred_check_branch
          %786 = sbr.rel (%p784) target = $region64
        $region63: #{tpu_custom_call.1} parent=39 // pred_region
          %s788 = ssub.s32 128, 128
          %789 = vsyncadd %s780, %s788
          %s790 = smul.addr %s28, 128
          %s791 = scalar_lea.hbm %s5, %s790
          %s793 = sshll.u32 %s783, 4
          %s794 = int_to_ptr.vmem [resolvable:$true] %s793
          %796 = dma.vmem_to_hbm [thread:$0]  %s794, 128, %s791, %s780
        $region64: #{tpu_custom_call.1} parent=39 // pred_fallthru
          _
      $region40: #{tpu_custom_call.1} parent=5 // pred_fallthru
        _
      %p797 = scmp.le.s32.totalorder 2, %s23
      // Predicated region
      $region65: #{tpu_custom_call.1} parent=5 // pred_check
        %p798 = pneg %p797
      $region66: #{tpu_custom_call.1} parent=5 // pred_check_branch
        %800 = sbr.rel (%p798) target = $region68
      $region67: #{tpu_custom_call.1} parent=5 // pred_region
        %s801 = ssub.s32 %s23, 2
        // Predicated region
        $region69: #{tpu_custom_call.1} parent=67 // pred_check
          %p802 = pneg %p182
        $region70: #{tpu_custom_call.1} parent=67 // pred_check_branch
          %804 = sbr.rel (%p802) target = $region72
        $region71: #{tpu_custom_call.1} parent=67 // pred_region
          %s805 = sand.u32 %s167, 1
          %s806 = scalar_lea.sflag [#allocation4], %s805
          %s807 = sand.u32 %s167, 1
          %s808 = smul.addr %s807, 8
          %s809 = scalar_lea.vmem [#allocation11], %s808
          %810 = dma.done %s806, 128
        $region72: #{tpu_custom_call.1} parent=67 // pred_fallthru
          _
      $region68: #{tpu_custom_call.1} parent=5 // pred_fallthru
        _
    $region6: #{tpu_custom_call.1} parent=1 // loop_footer
      %s27 = sadd.s32 1, %s23
    $region7: #{tpu_custom_call.1} parent=1 // loop_footer_branch
      %22 = sbr.rel target = $region3
    $region8: #{tpu_custom_call.1} parent=1 // loop_exit
      _
    %811 = vsyncpa [#allocation3], 1
    %s812 = scalar_lea.sflag [#allocation3], 1
    %813 = vsyncpa %s812, 1
    %814 = vsyncpa [#allocation6], 1
    %s815 = scalar_lea.sflag [#allocation6], 1
    %816 = vsyncpa %s815, 1
    %817 = vsyncpa [#allocation9], 1
    %s818 = scalar_lea.sflag [#allocation9], 1
    %819 = vsyncpa %s818, 1
    %820 = vsyncpa [#allocation4], 1
    %s821 = scalar_lea.sflag [#allocation4], 1
    %822 = vsyncpa %s821, 1

</llo_original>
